<compile_context>
chip_gen: v7x
topology: tpu7x:2x2x1
jax: 0.10.0
libtpu: 0.0.40
codegen_flags: <defaults>
</compile_context>

<pallas_src>
import jax
import jax.numpy as jnp
from jax.experimental import pallas as pl
from jax.experimental.pallas import tpu as pltpu


def _make_head_fusion_kernel(num_chd, batch, in_ch, tile_t):
    """out[b] = relu( W_km @ concat_k(X_k[b]) + shift ), one MXU call/step."""

    def kernel(*refs):
        x_refs = refs[:num_chd]                          # each (B, in_ch, tile_t)
        w_ref, shift_ref, o_ref, x_scratch = refs[num_chd:]

        # Concatenate the K inputs and B batch slabs into one dense operand:
        # x_scratch[k*in_ch + c, b*tile_t + t] = x_k[b, c, t].
        # (static, unrolled; each slab is a cheap contiguous vld/vst)
        for k in range(num_chd):
            for b in range(batch):
                x_scratch[k * in_ch:(k + 1) * in_ch,
                          b * tile_t:(b + 1) * tile_t] = x_refs[k][b]

        # Single MXU matmul with f32 accumulator: (H, Cin) @ (Cin, B*tile_t).
        acc = jnp.dot(w_ref[...], x_scratch[...],
                      preferred_element_type=jnp.float32)

        # f32 affine (folded conv-bias + BN) + ReLU, once on the whole slab.
        y = jnp.maximum(acc + shift_ref[...], 0.0).astype(o_ref.dtype)

        for b in range(batch):
            o_ref[b] = y[:, b * tile_t:(b + 1) * tile_t]

    return kernel


def head_fusion_pallas(inputs, w, conv_bias, bn_gamma, bn_beta, bn_mean, bn_var,
                       eps=1e-5):
    """inputs: list of num_chd arrays, each (B, in_ch, T).

    Matmul runs in the inputs' dtype (pass bf16 activations for the HBM win);
    BN affine + ReLU are f32; output matches the input dtype.
    """
    num_chd = len(inputs)
    B, in_ch, T = inputs[0].shape
    H = w.shape[0]
    Cin = in_ch * num_chd
    assert w.shape == (H, Cin)

    x_dtype = inputs[0].dtype
    out_dtype = x_dtype

    # --- trace-time parameter folding (all tiny, weight-only ops) ---------
    # Eval-mode BN: scale folded into the weights (in f32), shift stays f32.
    scale = bn_gamma.astype(jnp.float32) / jnp.sqrt(bn_var.astype(jnp.float32) + eps)
    shift = ((conv_bias.astype(jnp.float32) - bn_mean.astype(jnp.float32)) * scale
             + bn_beta.astype(jnp.float32)).reshape(H, 1)              # (H, 1) f32
    w_eff = w.astype(jnp.float32) * scale[:, None]                     # (H, Cin) f32

    # Re-order weight columns to k-major so they match the kernel-side concat:
    # kernel row r = k*in_ch + c  <->  PyTorch fused channel m = c*num_chd + k.
    w_km = jnp.transpose(w_eff.reshape(H, in_ch, num_chd), (0, 2, 1)).reshape(H, Cin)
    w_km = w_km.astype(x_dtype)

    # --- grid: single step at tiny sizes; tile T ("parallel") when large ---
    if T >= 1024 and T % 512 == 0:
        tile_t = 512
    else:
        tile_t = T
    n_t = T // tile_t

    kernel = _make_head_fusion_kernel(num_chd, B, in_ch, tile_t)

    x_bytes = sum(int(x.size) * x.dtype.itemsize for x in inputs)
    param_bytes = int(w_km.size) * w_km.dtype.itemsize + H * 4
    out_bytes = B * H * T * jnp.dtype(out_dtype).itemsize
    cost = pl.CostEstimate(
        flops=2 * B * H * Cin * T,
        transcendentals=0,
        bytes_accessed=x_bytes + param_bytes + out_bytes,
    )

    x_map = lambda i: (0, 0, i)
    p_map = lambda i: (0, 0)

    out = pl.pallas_call(
        kernel,
        out_shape=jax.ShapeDtypeStruct((B, H, T), out_dtype),
        grid_spec=pltpu.PrefetchScalarGridSpec(
            num_scalar_prefetch=0,
            grid=(n_t,),
            in_specs=(
                [pl.BlockSpec((B, in_ch, tile_t), x_map) for _ in range(num_chd)]
                + [pl.BlockSpec((H, Cin), p_map),
                   pl.BlockSpec((H, 1), p_map)]
            ),
            out_specs=pl.BlockSpec((B, H, tile_t), x_map),
            scratch_shapes=[pltpu.VMEM((Cin, B * tile_t), x_dtype)],
        ),
        compiler_params=pltpu.CompilerParams(
            dimension_semantics=("parallel",)),
        cost_estimate=cost,
    )(*inputs, w_km, shift)
    return out


def head_fusion_reference(inputs, w, conv_bias, bn_gamma, bn_beta, bn_mean,
                          bn_var, eps=1e-5):
    """Pure-JAX reference matching the PyTorch semantics (eval mode)."""
    num_chd = len(inputs)
    B, in_ch, T = inputs[0].shape
    combined = jnp.stack(inputs, axis=-1)                          # (B, C, T, K)
    x = jnp.transpose(combined, (0, 1, 3, 2)).reshape(B, in_ch * num_chd, T)
    z = jnp.einsum("hc,bct->bht", w, x) + conv_bias[None, :, None]
    z = (z - bn_mean[None, :, None]) / jnp.sqrt(bn_var[None, :, None] + eps)
    z = z * bn_gamma[None, :, None] + bn_beta[None, :, None]
    return jnp.maximum(z, 0.0)


if __name__ == "__main__":
    # Module config: Head_fusion(in_ch=4, hid_ch=32, num_chd=3)
    B, in_ch, T = 2, 4, 128
    num_chd, hid_ch = 3, 32
    Cin = in_ch * num_chd

    key = jax.random.PRNGKey(0)
    k_in, k_w, k_b = jax.random.split(key, 3)

    inputs = [
        jax.random.normal(jax.random.fold_in(k_in, i), (B, in_ch, T),
                          dtype=jnp.float32)
        for i in range(num_chd)
    ]

    # Deterministic parameters (Conv1d 1x1 weight/bias, non-trivial BN stats).
    w = jax.random.normal(k_w, (hid_ch, Cin), dtype=jnp.float32) * 0.1
    conv_bias = jax.random.normal(k_b, (hid_ch,), dtype=jnp.float32) * 0.1
    bn_gamma = jnp.ones((hid_ch,), jnp.float32) * 1.1
    bn_beta = jnp.full((hid_ch,), 0.05, jnp.float32)
    bn_mean = jnp.full((hid_ch,), 0.02, jnp.float32)
    bn_var = jnp.ones((hid_ch,), jnp.float32) * 0.9

    # --- f32 path: tight numerical check ----------------------------------
    out = head_fusion_pallas(inputs, w, conv_bias, bn_gamma, bn_beta,
                             bn_mean, bn_var)
    out = jax.block_until_ready(out)
    ref = head_fusion_reference(inputs, w, conv_bias, bn_gamma, bn_beta,
                                bn_mean, bn_var)
    assert out.shape == (B, hid_ch, T)
    assert jnp.allclose(out, ref, atol=1e-4, rtol=1e-4)

    # --- bf16 path (upstream model in bf16): halves HBM read/write bytes ---
    inputs_bf16 = [x.astype(jnp.bfloat16) for x in inputs]
    out_bf = head_fusion_pallas(inputs_bf16, w, conv_bias, bn_gamma, bn_beta,
                                bn_mean, bn_var)
    out_bf = jax.block_until_ready(out_bf)
    ref_bf = head_fusion_reference([x.astype(jnp.float32) for x in inputs_bf16],
                                   w, conv_bias, bn_gamma, bn_beta,
                                   bn_mean, bn_var)
    assert out_bf.dtype == jnp.bfloat16
    assert jnp.allclose(out_bf.astype(jnp.float32), ref_bf,
                        atol=5e-2, rtol=5e-2)

    print("KERNEL_OK")
</pallas_src>

<mosaic_0001>
module attributes {stable_mosaic.version = 11 : i64} {
  func.func @kernel(%arg0: i32, %arg1: memref<2x4x128xf32, #tpu.memory_space<vmem>>, %arg2: memref<2x4x128xf32, #tpu.memory_space<vmem>>, %arg3: memref<2x4x128xf32, #tpu.memory_space<vmem>>, %arg4: memref<32x12xf32, #tpu.memory_space<vmem>>, %arg5: memref<32x1xf32, #tpu.memory_space<vmem>>, %arg6: memref<2x32x128xf32, #tpu.memory_space<vmem>>, %arg7: memref<12x256xf32, #tpu.memory_space<vmem>>) attributes {dimension_semantics = [#tpu.dimension_semantics<parallel>], iteration_bounds = array<i64: 1>, scalar_prefetch = 0 : i64, scratch_operands = 1 : i64, tpu.core_type = #tpu.core_type<tc>, window_params = [{transform_indices = @transform_0, window_bounds = array<i64: 2, 4, 128>}, {transform_indices = @transform_1, window_bounds = array<i64: 2, 4, 128>}, {transform_indices = @transform_2, window_bounds = array<i64: 2, 4, 128>}, {pipeline_mode = #tpu.pipeline_mode<synchronous>, transform_indices = @transform_3, window_bounds = array<i64: 32, 12>}, {pipeline_mode = #tpu.pipeline_mode<synchronous>, transform_indices = @transform_4, window_bounds = array<i64: 32, 1>}, {transform_indices = @transform_5, window_bounds = array<i64: 2, 32, 128>}]} {
    %c0 = arith.constant 0 : index
    %c0_0 = arith.constant 0 : index
    %c0_1 = arith.constant 0 : index
    %0 = vector.load %arg1[%c0, %c0_0, %c0_1] : memref<2x4x128xf32, #tpu.memory_space<vmem>>, vector<1x4x128xf32>
    %1 = vector.shape_cast %0 : vector<1x4x128xf32> to vector<4x128xf32>
    %c0_2 = arith.constant 0 : index
    %c0_3 = arith.constant 0 : index
    %2 = vector.load %arg7[%c0_2, %c0_3] : memref<12x256xf32, #tpu.memory_space<vmem>>, vector<4x128xf32>
    tpu.vector_store %arg7[%c0_2, %c0_3], %1 {strides = array<i32>} : memref<12x256xf32, #tpu.memory_space<vmem>>, vector<4x128xf32>,
    %c1 = arith.constant 1 : index
    %c0_4 = arith.constant 0 : index
    %c0_5 = arith.constant 0 : index
    %3 = vector.load %arg1[%c1, %c0_4, %c0_5] : memref<2x4x128xf32, #tpu.memory_space<vmem>>, vector<1x4x128xf32>
    %4 = vector.shape_cast %3 : vector<1x4x128xf32> to vector<4x128xf32>
    %c0_6 = arith.constant 0 : index
    %c128 = arith.constant 128 : index
    %5 = vector.load %arg7[%c0_6, %c128] : memref<12x256xf32, #tpu.memory_space<vmem>>, vector<4x128xf32>
    tpu.vector_store %arg7[%c0_6, %c128], %4 {strides = array<i32>} : memref<12x256xf32, #tpu.memory_space<vmem>>, vector<4x128xf32>,
    %c0_7 = arith.constant 0 : index
    %c0_8 = arith.constant 0 : index
    %c0_9 = arith.constant 0 : index
    %6 = vector.load %arg2[%c0_7, %c0_8, %c0_9] : memref<2x4x128xf32, #tpu.memory_space<vmem>>, vector<1x4x128xf32>
    %7 = vector.shape_cast %6 : vector<1x4x128xf32> to vector<4x128xf32>
    %c4 = arith.constant 4 : index
    %c0_10 = arith.constant 0 : index
    %8 = vector.load %arg7[%c4, %c0_10] : memref<12x256xf32, #tpu.memory_space<vmem>>, vector<4x128xf32>
    tpu.vector_store %arg7[%c4, %c0_10], %7 {strides = array<i32>} : memref<12x256xf32, #tpu.memory_space<vmem>>, vector<4x128xf32>,
    %c1_11 = arith.constant 1 : index
    %c0_12 = arith.constant 0 : index
    %c0_13 = arith.constant 0 : index
    %9 = vector.load %arg2[%c1_11, %c0_12, %c0_13] : memref<2x4x128xf32, #tpu.memory_space<vmem>>, vector<1x4x128xf32>
    %10 = vector.shape_cast %9 : vector<1x4x128xf32> to vector<4x128xf32>
    %c4_14 = arith.constant 4 : index
    %c128_15 = arith.constant 128 : index
    %11 = vector.load %arg7[%c4_14, %c128_15] : memref<12x256xf32, #tpu.memory_space<vmem>>, vector<4x128xf32>
    tpu.vector_store %arg7[%c4_14, %c128_15], %10 {strides = array<i32>} : memref<12x256xf32, #tpu.memory_space<vmem>>, vector<4x128xf32>,
    %c0_16 = arith.constant 0 : index
    %c0_17 = arith.constant 0 : index
    %c0_18 = arith.constant 0 : index
    %12 = vector.load %arg3[%c0_16, %c0_17, %c0_18] : memref<2x4x128xf32, #tpu.memory_space<vmem>>, vector<1x4x128xf32>
    %13 = vector.shape_cast %12 : vector<1x4x128xf32> to vector<4x128xf32>
    %c8 = arith.constant 8 : index
    %c0_19 = arith.constant 0 : index
    %14 = vector.load %arg7[%c8, %c0_19] : memref<12x256xf32, #tpu.memory_space<vmem>>, vector<4x128xf32>
    tpu.vector_store %arg7[%c8, %c0_19], %13 {strides = array<i32>} : memref<12x256xf32, #tpu.memory_space<vmem>>, vector<4x128xf32>,
    %c1_20 = arith.constant 1 : index
    %c0_21 = arith.constant 0 : index
    %c0_22 = arith.constant 0 : index
    %15 = vector.load %arg3[%c1_20, %c0_21, %c0_22] : memref<2x4x128xf32, #tpu.memory_space<vmem>>, vector<1x4x128xf32>
    %16 = vector.shape_cast %15 : vector<1x4x128xf32> to vector<4x128xf32>
    %c8_23 = arith.constant 8 : index
    %c128_24 = arith.constant 128 : index
    %17 = vector.load %arg7[%c8_23, %c128_24] : memref<12x256xf32, #tpu.memory_space<vmem>>, vector<4x128xf32>
    tpu.vector_store %arg7[%c8_23, %c128_24], %16 {strides = array<i32>} : memref<12x256xf32, #tpu.memory_space<vmem>>, vector<4x128xf32>,
    %c0_25 = arith.constant 0 : index
    %c0_26 = arith.constant 0 : index
    %18 = vector.load %arg4[%c0_25, %c0_26] : memref<32x12xf32, #tpu.memory_space<vmem>>, vector<32x12xf32>
    %c0_27 = arith.constant 0 : index
    %c0_28 = arith.constant 0 : index
    %19 = vector.load %arg7[%c0_27, %c0_28] : memref<12x256xf32, #tpu.memory_space<vmem>>, vector<12x256xf32>
    %cst = arith.constant dense<0.000000e+00> : vector<32x256xf32>
    %20 = tpu.matmul %18, %19, %cst {dimension_numbers = #tpu.dot_dimension_numbers<[1], [0], [0], [1], [0, 0, 1, 1], [], []>} : vector<32x12xf32>, vector<12x256xf32>, vector<32x256xf32> -> vector<32x256xf32>
    %c0_29 = arith.constant 0 : index
    %c0_30 = arith.constant 0 : index
    %21 = vector.load %arg5[%c0_29, %c0_30] : memref<32x1xf32, #tpu.memory_space<vmem>>, vector<32x1xf32>
    %22 = vector.broadcast %21 : vector<32x1xf32> to vector<32x256xf32>
    %23 = arith.addf %20, %22 : vector<32x256xf32>
    %cst_31 = arith.constant 0.000000e+00 : f32
    %24 = vector.broadcast %cst_31 : f32 to vector<32x256xf32>
    %25 = arith.maximumf %23, %24 : vector<32x256xf32>
    %26 = vector.extract_strided_slice %25 {offsets = [0, 0], sizes = [32, 128], strides = [1, 1]} : vector<32x256xf32> to vector<32x128xf32>
    %c0_32 = arith.constant 0 : index
    %c0_33 = arith.constant 0 : index
    %c0_34 = arith.constant 0 : index
    %27 = vector.load %arg6[%c0_32, %c0_33, %c0_34] : memref<2x32x128xf32, #tpu.memory_space<vmem>>, vector<1x32x128xf32>
    %28 = vector.shape_cast %27 : vector<1x32x128xf32> to vector<32x128xf32>
    %29 = vector.shape_cast %26 : vector<32x128xf32> to vector<1x32x128xf32>
    tpu.vector_store %arg6[%c0_32, %c0_33, %c0_34], %29 {strides = array<i32>} : memref<2x32x128xf32, #tpu.memory_space<vmem>>, vector<1x32x128xf32>,
    %30 = vector.extract_strided_slice %25 {offsets = [0, 128], sizes = [32, 128], strides = [1, 1]} : vector<32x256xf32> to vector<32x128xf32>
    %c1_35 = arith.constant 1 : index
    %c0_36 = arith.constant 0 : index
    %c0_37 = arith.constant 0 : index
    %31 = vector.load %arg6[%c1_35, %c0_36, %c0_37] : memref<2x32x128xf32, #tpu.memory_space<vmem>>, vector<1x32x128xf32>
    %32 = vector.shape_cast %31 : vector<1x32x128xf32> to vector<32x128xf32>
    %33 = vector.shape_cast %30 : vector<32x128xf32> to vector<1x32x128xf32>
    tpu.vector_store %arg6[%c1_35, %c0_36, %c0_37], %33 {strides = array<i32>} : memref<2x32x128xf32, #tpu.memory_space<vmem>>, vector<1x32x128xf32>,
    return
  }
  func.func @transform_0(%arg0: i32) -> (i32, i32, i32) {
    %c0_i32 = arith.constant 0 : i32
    %c0_i32_0 = arith.constant 0 : i32
    %c0_i32_1 = arith.constant 0 : i32
    return %c0_i32, %c0_i32_0, %arg0 : i32, i32, i32
  }
  func.func @transform_1(%arg0: i32) -> (i32, i32, i32) {
    %c0_i32 = arith.constant 0 : i32
    %c0_i32_0 = arith.constant 0 : i32
    %c0_i32_1 = arith.constant 0 : i32
    return %c0_i32, %c0_i32_0, %arg0 : i32, i32, i32
  }
  func.func @transform_2(%arg0: i32) -> (i32, i32, i32) {
    %c0_i32 = arith.constant 0 : i32
    %c0_i32_0 = arith.constant 0 : i32
    %c0_i32_1 = arith.constant 0 : i32
    return %c0_i32, %c0_i32_0, %arg0 : i32, i32, i32
  }
  func.func @transform_3(%arg0: i32) -> (i32, i32) {
    %c0_i32 = arith.constant 0 : i32
    %c0_i32_0 = arith.constant 0 : i32
    %c0_i32_1 = arith.constant 0 : i32
    return %c0_i32, %c0_i32_0 : i32, i32
  }
  func.func @transform_4(%arg0: i32) -> (i32, i32) {
    %c0_i32 = arith.constant 0 : i32
    %c0_i32_0 = arith.constant 0 : i32
    %c0_i32_1 = arith.constant 0 : i32
    return %c0_i32, %c0_i32_0 : i32, i32
  }
  func.func @transform_5(%arg0: i32) -> (i32, i32, i32) {
    %c0_i32 = arith.constant 0 : i32
    %c0_i32_0 = arith.constant 0 : i32
    %c0_i32_1 = arith.constant 0 : i32
    return %c0_i32, %c0_i32_0, %arg0 : i32, i32, i32
  }
}

</mosaic_0001>

<llo_original>
// kernel: tpu_custom_call.1
$region0: #{tpu_custom_call.1}
  #allocation0 [shape = 'u32[]', space=smem, size = 0x4, offset = 0x4, fixed_abs, tag = 'smem constant byte address 0x4 - core index']
  #allocation1 [shape = 'u32[144,128]{1,0:T(1,128)}', space=vmem, size = 0x12000, scoped, tag = 'internal scratch']
  #allocation2 [shape = 'f32[12,256]{1,0:T(8,128)}', space=vmem, size = 0x4000, scoped, tag = 'scratch operand']
  %s0 = inlined_call_operand.vmem [shape: f32[2,4,128], index: 0, kind: input, shape index: {}]
  %s1 = inlined_call_operand.vmem [shape: f32[2,4,128], index: 1, kind: input, shape index: {}]
  %s2 = inlined_call_operand.vmem [shape: f32[2,4,128], index: 2, kind: input, shape index: {}]
  %s3 = inlined_call_operand.vmem [shape: f32[32,12], index: 3, kind: input, shape index: {}]
  %s4 = inlined_call_operand.vmem [shape: f32[32,1], index: 4, kind: input, shape index: {}]
  %s5 = inlined_call_operand.hbm [shape: f32[2,32,128], index: 5, kind: output, shape index: {}]
  %s6 = sld [smem:[#allocation0]]
  $region30: #{tpu_custom_call.1} parent=0
    _
  %s8 = ssub.s32 1, %s6
  %s9 = scalar_select 0, %s8, %s6
  $region1: #{tpu_custom_call.1} parent=0
    #allocation3 [shape = 'u8[32768]{0}', space=vmem, size = 0x8000, scoped, tag = 'output window, operand 0, single buffered']
    #allocation4 [shape = 's32[1]{0}', space=sflag, size = 0x4, scoped, tag = 'scoped memory for tpu_custom_call.1']
    %10 = vsyncpa [#allocation4], 0
    // Predicated region
    $region2: #{tpu_custom_call.1} parent=1 // pred_check
      _
    $region3: #{tpu_custom_call.1} parent=1 // pred_check_branch
      %12 = sbr.rel (0) target = $region5
    $region4: #{tpu_custom_call.1} parent=1 // pred_region
      _
    $region5: #{tpu_custom_call.1} parent=1 // pred_fallthru
      _
    // Predicated region
    $region6: #{tpu_custom_call.1} parent=1 // pred_check
      _
    $region7: #{tpu_custom_call.1} parent=1 // pred_check_branch
      %14 = sbr.rel (0) target = $region9
    $region8: #{tpu_custom_call.1} parent=1 // pred_region
      _
    $region9: #{tpu_custom_call.1} parent=1 // pred_fallthru
      _
    // Predicated region
    $region10: #{tpu_custom_call.1} parent=1 // pred_check
      _
    $region11: #{tpu_custom_call.1} parent=1 // pred_check_branch
      %16 = sbr.rel (0) target = $region13
    $region12: #{tpu_custom_call.1} parent=1 // pred_region
      _
    $region13: #{tpu_custom_call.1} parent=1 // pred_fallthru
      _
    // Predicated region
    $region14: #{tpu_custom_call.1} parent=1 // pred_check
      _
    $region15: #{tpu_custom_call.1} parent=1 // pred_check_branch
      %18 = sbr.rel (0) target = $region17
    $region16: #{tpu_custom_call.1} parent=1 // pred_region
      _
    $region17: #{tpu_custom_call.1} parent=1 // pred_fallthru
      _
    // Predicated region
    $region18: #{tpu_custom_call.1} parent=1 // pred_check
      _
    $region19: #{tpu_custom_call.1} parent=1 // pred_check_branch
      %20 = sbr.rel (0) target = $region21
    $region20: #{tpu_custom_call.1} parent=1 // pred_region
      _
    $region21: #{tpu_custom_call.1} parent=1 // pred_fallthru
      _
    %v21 = vld [vmem:[%s0] sm:$0xf]
    %22 = vst [vmem:[#allocation2] sm:$0xf] %v21
    %s23 = scalar_lea.vmem %s0, 4
    %v24 = vld [vmem:[%s23] sm:$0xf]
    %25 = vst [vmem:[#allocation2 + $0x8] sm:$0xf] %v24
    %v26 = vld [vmem:[%s1] sm:$0xf]
    %v28 = vrot.slane %v26, 4
    %30 = vst [vmem:[#allocation2] sm:$0xf0] %v28
    %s31 = scalar_lea.vmem %s1, 4
    %v32 = vld [vmem:[%s31] sm:$0xf]
    %v34 = vrot.slane %v32, 4
    %36 = vst [vmem:[#allocation2 + $0x8] sm:$0xf0] %v34
    %v37 = vld [vmem:[%s2] sm:$0xf]
    %38 = vst [vmem:[#allocation2 + $0x10] sm:$0xf] %v37
    %s39 = scalar_lea.vmem %s2, 4
    %v40 = vld [vmem:[%s39] sm:$0xf]
    %41 = vst [vmem:[#allocation2 + $0x18] sm:$0xf] %v40
    %v42 = vld [vmem:[%s3] sm:$0xff]
    %v43 = vld [vmem:[%s3 + $0x8] sm:$0xff]
    %v44 = vld [vmem:[%s3 + $0x10] sm:$0xff]
    %v45 = vld [vmem:[%s3 + $0x18] sm:$0xff]
    %v46 = vld [vmem:[#allocation2] sm:$0xff]
    %v47 = vld [vmem:[#allocation2 + $0x8] sm:$0xff]
    %v48 = vld [vmem:[#allocation2 + $0x10] sm:$0xf]
    %v49 = vld [vmem:[#allocation2 + $0x18] sm:$0xf]
    %v50 = vld [vmem:[%s4] sm:$0xff]
    %v51 = vld [vmem:[%s4 + $0x8] sm:$0xff]
    %v52 = vld [vmem:[%s4 + $0x10] sm:$0xff]
    %v53 = vld [vmem:[%s4 + $0x18] sm:$0xff]
    %55 = vset.pattern.permute.xlu0 0
    %56 = vperm.xlu0 %55, %v50
    %v57 = vpop.permute.xlu0 %56
    %60 = vset.pattern.permute.xlu0 0
    %61 = vperm.xlu0 %60, %v51
    %v62 = vpop.permute.xlu0 %61
    %65 = vset.pattern.permute.xlu0 0
    %66 = vperm.xlu0 %65, %v52
    %v67 = vpop.permute.xlu0 %66
    %70 = vset.pattern.permute.xlu0 0
    %71 = vperm.xlu0 %70, %v53
    %v72 = vpop.permute.xlu0 %71
    %vm74 = vcmask 97280
    %v76 = vsel %vm74, %v42, 0
    %v79 = vsel %vm74, %v43, 0
    %v82 = vsel %vm74, %v44, 0
    %v85 = vsel %vm74, %v45, 0
    %vm87 = vcmask 1043456
    %v89 = vsel %vm87, %v48, 0
    %v92 = vsel %vm87, %v49, 0
    %94 = vmatprep.subr.mxu0 %v47
    %95 = vmatpush1.msra.mxu0 %v46
    %96 = vmatprep.subr.mxu0 %v92
    %97 = vmatpush1.msra.mxu0 %v89
    %98 = vmatprep.subr.mxu0 0.0
    %99 = vmatpush1.msra.mxu0 0.0
    %100 = vmatprep.subr.mxu0 0.0
    %101 = vmatpush1.msra.mxu0 0.0
    %102 = vmatprep.subr.mxu0 0.0
    %103 = vmatpush1.msra.mxu0 0.0
    %104 = vmatprep.subr.mxu0 0.0
    %105 = vmatpush1.msra.mxu0 0.0
    %106 = vmatprep.subr.mxu0 0.0
    %107 = vmatpush1.msra.mxu0 0.0
    %108 = vmatprep.subr.mxu0 0.0
    %109 = vmatpush1.msra.mxu0 0.0
    %110 = vmatprep.subr.mxu0 0.0
    %111 = vmatpush1.msra.mxu0 0.0
    %112 = vmatprep.subr.mxu0 0.0
    %113 = vmatpush1.msra.mxu0 0.0
    %114 = vmatprep.subr.mxu0 0.0
    %115 = vmatpush1.msra.mxu0 0.0
    %116 = vmatprep.subr.mxu0 0.0
    %117 = vmatpush1.msra.mxu0 0.0
    %118 = vmatprep.subr.mxu0 0.0
    %119 = vmatpush1.msra.mxu0 0.0
    %120 = vmatprep.subr.mxu0 0.0
    %121 = vmatpush1.msra.mxu0 0.0
    %122 = vmatprep.subr.mxu0 0.0
    %123 = vmatpush1.msra.mxu0 0.0
    %124 = vmatprep.subr.mxu0 0.0
    %125 = vmatpush1.msra.mxu0 0.0
    %126 = vmatprep.subr.mxu0 0.0
    %127 = vmatpush1.msra.mxu0 0.0
    %128 = vmatprep.subr.mxu0 0.0
    %129 = vmatpush1.msra.mxu0 0.0
    %130 = vmatprep.subr.mxu0 0.0
    %131 = vmatpush1.msra.mxu0 0.0
    %132 = vmatprep.subr.mxu0 0.0
    %133 = vmatpush1.msra.mxu0 0.0
    %134 = vmatprep.subr.mxu0 0.0
    %135 = vmatpush1.msra.mxu0 0.0
    %136 = vmatprep.subr.mxu0 0.0
    %137 = vmatpush1.msra.mxu0 0.0
    %138 = vmatprep.subr.mxu0 0.0
    %139 = vmatpush1.msra.mxu0 0.0
    %140 = vmatprep.subr.mxu0 0.0
    %141 = vmatpush1.msra.mxu0 0.0
    %142 = vmatprep.subr.mxu0 0.0
    %143 = vmatpush1.msra.mxu0 0.0
    %144 = vmatprep.subr.mxu0 0.0
    %145 = vmatpush1.msra.mxu0 0.0
    %146 = vmatprep.subr.mxu0 0.0
    %147 = vmatpush1.msra.mxu0 0.0
    %148 = vmatprep.subr.mxu0 0.0
    %149 = vmatpush1.msra.mxu0 0.0
    %150 = vmatprep.subr.mxu0 0.0
    %151 = vmatpush1.msra.mxu0 0.0
    %152 = vmatprep.subr.mxu0 0.0
    %153 = vmatpush1.msra.mxu0 0.0
    %154 = vmatprep.subr.mxu0 0.0
    %155 = vmatpush1.msra.mxu0 0.0
    %156 = vmatprep.subr.mxu0 0.0
    %157 = vmatpush1.msra.mxu0 0.0
    %158 = vmatprep.mubr.f32.mxu0 0.0
    %159 = vmatmul.mubr.f32.gmra.mrb[0].mxu0 %v76
    %v160 = vpop.f32.mrb[0].mxu0
    %v161 = vadd.f32 %v57, %v160
    %v162 = vpop.f32.mrb[0].mxu0
    %v163 = vadd.f32 %v57, %v162
    %164 = vmatprep.mubr.f32.mxu0 0.0
    %165 = vmatmul.mubr.f32.gmra.mrb[0].mxu0 %v79
    %v166 = vpop.f32.mrb[0].mxu0
    %v167 = vadd.f32 %v62, %v166
    %v168 = vpop.f32.mrb[0].mxu0
    %v169 = vadd.f32 %v62, %v168
    %170 = vmatprep.mubr.f32.mxu0 0.0
    %171 = vmatmul.mubr.f32.gmra.mrb[0].mxu0 %v82
    %v172 = vpop.f32.mrb[0].mxu0
    %v173 = vadd.f32 %v67, %v172
    %v174 = vpop.f32.mrb[0].mxu0
    %v175 = vadd.f32 %v67, %v174
    %176 = vmatprep.mubr.f32.mxu0 0.0
    %177 = vmatmul.mubr.f32.gmra.mrb[0].mxu0 %v85
    %v178 = vpop.f32.mrb[0].mxu0
    %v179 = vadd.f32 %v72, %v178
    %v180 = vpop.f32.mrb[0].mxu0
    %v181 = vadd.f32 %v72, %v180
    %182 = vdwg.mxu0
    %v183 = vmax.f32 %v161, 0.0
    %v184 = vmax.f32 %v163, 0.0
    %v185 = vmax.f32 %v167, 0.0
    %v186 = vmax.f32 %v169, 0.0
    %v187 = vmax.f32 %v173, 0.0
    %v188 = vmax.f32 %v175, 0.0
    %v189 = vmax.f32 %v179, 0.0
    %v190 = vmax.f32 %v181, 0.0
    %191 = vst [vmem:[#allocation3] sm:$0xff] %v183
    %192 = vst [vmem:[#allocation3 + $0x8] sm:$0xff] %v185
    %193 = vst [vmem:[#allocation3 + $0x10] sm:$0xff] %v187
    %194 = vst [vmem:[#allocation3 + $0x18] sm:$0xff] %v189
    %s195 = scalar_lea.vmem [#allocation3], 32
    %196 = vst [vmem:[%s195] sm:$0xff] %v184
    %197 = vst [vmem:[%s195 + $0x8] sm:$0xff] %v186
    %198 = vst [vmem:[%s195 + $0x10] sm:$0xff] %v188
    %199 = vst [vmem:[%s195 + $0x18] sm:$0xff] %v190
    // Predicated region
    $region22: #{tpu_custom_call.1} parent=1 // pred_check
      _
    $region23: #{tpu_custom_call.1} parent=1 // pred_check_branch
      %201 = sbr.rel (0) target = $region25
    $region24: #{tpu_custom_call.1} parent=1 // pred_region
      %s203 = ssub.s32 1024, 1024
      %204 = vsyncadd [#allocation4], %s203
      %s205 = sshll.u32 [#allocation3], 4
      %s206 = int_to_ptr.vmem [resolvable:$true] %s205
      %211 = dma.vmem_to_hbm [thread:$0]  %s206, 1024, %s5, [#allocation4], 128, 128, 8
    $region25: #{tpu_custom_call.1} parent=1 // pred_fallthru
      _
    // Predicated region
    $region26: #{tpu_custom_call.1} parent=1 // pred_check
      _
    $region27: #{tpu_custom_call.1} parent=1 // pred_check_branch
      %213 = sbr.rel (0) target = $region29
    $region28: #{tpu_custom_call.1} parent=1 // pred_region
      %214 = dma.done [#allocation4], 1024
    $region29: #{tpu_custom_call.1} parent=1 // pred_fallthru
      _
    %215 = vsyncpa [#allocation4], 1

</llo_original>
